<compile_context>
chip_gen: v7x
topology: tpu7x:2x2x1
jax: 0.10.0
libtpu: 0.0.40
codegen_flags: <defaults>
</compile_context>

<pallas_src>
import functools

import jax
import jax.numpy as jnp
from jax import lax
from jax.experimental import pallas as pl
from jax.experimental.pallas import tpu as pltpu


def _round_up(x, m):
    return (x + m - 1) // m * m


def _supcon_kernel(*refs, inv_temp, loss_scale, n_contrast, mask_from_labels):
    """One (TQ, TK) tile of the SupCon loss.

    refs (labels path):   alab [TQ,1], clab [1,TK], a [TQ,Dp], c [TK,Dp],
                          loss_out [TQ,1], denom_acc, s1_acc, s2_acc
    refs (mask path):     mask [TQ,TK], a, c, loss_out, denom_acc, s1_acc, s2_acc
    """
    if mask_from_labels:
        (alab_ref, clab_ref, a_ref, c_ref,
         loss_ref, denom_acc, s1_acc, s2_acc) = refs
    else:
        (mask_ref, a_ref, c_ref,
         loss_ref, denom_acc, s1_acc, s2_acc) = refs

    i = pl.program_id(0)
    j = pl.program_id(1)
    tq = a_ref.shape[0]
    tk = c_ref.shape[0]

    @pl.when(j == 0)
    def _():
        denom_acc[...] = jnp.zeros_like(denom_acc)
        s1_acc[...] = jnp.zeros_like(s1_acc)
        s2_acc[...] = jnp.zeros_like(s2_acc)

    # MXU matmul contracting the lane-resident feature dim of BOTH operands
    # (A @ C^T without an in-kernel transpose).  bf16 in, f32 accumulation.
    raw = lax.dot_general(a_ref[...], c_ref[...],
                          (((1,), (1,)), ((), ())),
                          preferred_element_type=jnp.float32)
    logits = raw * inv_temp                                     # [TQ, TK] f32
    # NOTE: the reference computes logits_max but never subtracts it; we match that.

    # Rebuild masks on the current tile: no [N, N] mask traffic.
    row = i * tq + lax.broadcasted_iota(jnp.int32, (tq, tk), 0)  # global anchor idx
    col = j * tk + lax.broadcasted_iota(jnp.int32, (tq, tk), 1)  # global contrast idx
    lmask = jnp.logical_and(row != col, col < n_contrast)        # logits_mask
    lmask_f = lmask.astype(jnp.float32)
    if mask_from_labels:
        pos_f = jnp.logical_and(alab_ref[...] == clab_ref[...],
                                lmask).astype(jnp.float32)       # positive mask
    else:
        pos_f = mask_ref[...] * lmask_f                          # applied exactly once

    denom_acc[...] += jnp.sum(jnp.exp(logits) * lmask_f, axis=1, keepdims=True)
    s1_acc[...] += jnp.sum(pos_f * logits, axis=1, keepdims=True)
    s2_acc[...] += jnp.sum(pos_f, axis=1, keepdims=True)

    @pl.when(j == pl.num_programs(1) - 1)
    def _():
        # mean_log_prob_pos = s1/s2 - log(denom);  loss = -(T/base_T) * that
        inv_s2 = pl.reciprocal(s2_acc[...], approx=True)         # EUP, ~free
        mean_log_prob_pos = s1_acc[...] * inv_s2 - jnp.log(denom_acc[...])
        loss_ref[...] = (-loss_scale) * mean_log_prob_pos


def supcon_loss(features, labels=None, mask=None, *,
                temperature=0.07, contrast_mode='all', base_temperature=0.07,
                matmul_dtype=jnp.bfloat16):
    """JAX/Pallas equivalent of SupConLoss.forward."""
    if features.ndim < 3:
        raise ValueError('`features` needs to be [bsz, n_views, ...]')
    bsz, n_views = features.shape[0], features.shape[1]
    features = features.reshape(bsz, n_views, -1)
    feat_dim = features.shape[-1]

    if labels is not None and mask is not None:
        raise ValueError('Cannot define both `labels` and `mask`')
    use_labels = mask is None
    if labels is None and mask is None:
        # SimCLR branch: eye(bsz) positive mask == "each sample its own class".
        base_labels = jnp.arange(bsz, dtype=jnp.int32)
    elif labels is not None:
        labels = jnp.asarray(labels).reshape(-1)
        if labels.shape[0] != bsz:
            raise ValueError('Num of labels does not match num of features')
        base_labels = labels.astype(jnp.int32)   # integer class ids expected
    else:
        mask = jnp.asarray(mask, jnp.float32)

    contrast_count = n_views
    # torch.cat(torch.unbind(features, dim=1), dim=0) -> view-major stacking.
    contrast_feature = jnp.transpose(features, (1, 0, 2)).reshape(
        n_views * bsz, feat_dim)
    if contrast_mode == 'one':
        anchor_feature = features[:, 0, :]
        anchor_count = 1
    elif contrast_mode == 'all':
        anchor_feature = contrast_feature
        anchor_count = contrast_count
    else:
        raise ValueError('Unknown mode: {}'.format(contrast_mode))

    n_anchor = anchor_count * bsz
    n_contrast = contrast_count * bsz

    # ---- tiling / padding ----------------------------------------------------
    # (TQ, TK) = (256, 512) f32 working set stays well under the default scoped
    # VMEM limit on v5e/v6e/v7x; small problems collapse to a single tile.
    d_pad = _round_up(feat_dim, 128)                 # lane-dense contraction dim
    tq = 256 if n_anchor >= 256 else _round_up(n_anchor, 8)
    tk = 512 if n_contrast >= 512 else _round_up(n_contrast, 128)
    na_pad = _round_up(n_anchor, tq)
    nc_pad = _round_up(n_contrast, tk)

    def pad2(x, r, c):
        return jnp.pad(x, ((0, r - x.shape[0]), (0, c - x.shape[1])))

    a_feat = pad2(anchor_feature, na_pad, d_pad).astype(matmul_dtype)
    c_feat = pad2(contrast_feature, nc_pad, d_pad).astype(matmul_dtype)

    grid = (na_pad // tq, nc_pad // tk)

    kernel = functools.partial(
        _supcon_kernel,
        inv_temp=1.0 / float(temperature),
        loss_scale=float(temperature) / float(base_temperature),
        n_contrast=n_contrast,
        mask_from_labels=use_labels)

    feat_specs = [
        pl.BlockSpec((tq, d_pad), lambda i, j: (i, 0)),   # anchor tile
        pl.BlockSpec((tk, d_pad), lambda i, j: (j, 0)),   # contrast tile (streamed)
    ]
    if use_labels:
        # mask.repeat(anchor_count, contrast_count)[i, j] == (label[i%bsz]==label[j%bsz])
        a_lab = jnp.pad(jnp.tile(base_labels, anchor_count),
                        (0, na_pad - n_anchor),
                        constant_values=-1).reshape(na_pad, 1)
        c_lab = jnp.pad(jnp.tile(base_labels, contrast_count),
                        (0, nc_pad - n_contrast),
                        constant_values=-1).reshape(1, nc_pad)
        inputs = (a_lab, c_lab, a_feat, c_feat)
        in_specs = [
            pl.BlockSpec((tq, 1), lambda i, j: (i, 0)),
            pl.BlockSpec((1, tk), lambda i, j: (0, j)),
        ] + feat_specs
    else:
        # TODO(synk): an arbitrary (possibly asymmetric) user mask cannot be rebuilt
        # from labels in-kernel; stream its [TQ, TK] tiles instead.
        mask_full = pad2(jnp.tile(mask, (anchor_count, contrast_count)),
                         na_pad, nc_pad)
        inputs = (mask_full, a_feat, c_feat)
        in_specs = [pl.BlockSpec((tq, tk), lambda i, j: (i, j))] + feat_specs

    per_row_loss = pl.pallas_call(
        kernel,
        out_shape=jax.ShapeDtypeStruct((na_pad, 1), jnp.float32),
        grid=grid,
        in_specs=in_specs,
        out_specs=pl.BlockSpec((tq, 1), lambda i, j: (i, 0)),
        scratch_shapes=[pltpu.VMEM((tq, 1), jnp.float32)] * 3,  # denom, s1, s2
        compiler_params=pltpu.CompilerParams(
            dimension_semantics=("parallel", "arbitrary")),
    )(*inputs)

    # Final scalar mean over the real (unpadded) anchor rows; tiny, fuses in XLA.
    return jnp.mean(per_row_loss[:n_anchor, 0])


if __name__ == "__main__":
    key = jax.random.PRNGKey(0)
    bsz, n_views, feat_dim = 8, 2, 32

    kf, _ = jax.random.split(key)
    features = jax.random.normal(kf, (bsz, n_views, feat_dim), dtype=jnp.float32)
    # SupCon features are conventionally L2-normalized (avoids exp overflow at T=0.07)
    features = features / jnp.linalg.norm(features, axis=-1, keepdims=True)
    labels = jnp.array([0, 1, 2, 3, 0, 1, 2, 3], dtype=jnp.int32)

    loss = supcon_loss(features, labels=labels,
                       temperature=0.07, contrast_mode='all',
                       base_temperature=0.07)
    loss = jax.block_until_ready(loss)
    assert jnp.isfinite(loss), "loss is not finite"

    # unsupervised (SimCLR) branch: mask = eye(bsz) via pseudo-labels
    loss_simclr = jax.block_until_ready(supcon_loss(features))
    assert jnp.isfinite(loss_simclr), "simclr loss is not finite"

    # 'one' contrast mode path
    loss_one = jax.block_until_ready(
        supcon_loss(features, labels=labels, contrast_mode='one'))
    assert jnp.isfinite(loss_one), "contrast_mode='one' loss is not finite"

    print("KERNEL_OK")
</pallas_src>

<mosaic_0001>
module attributes {stable_mosaic.version = 11 : i64} {
  func.func @_supcon_kernel(%arg0: i32, %arg1: i32, %arg2: memref<16x1xi32, #tpu.memory_space<vmem>>, %arg3: memref<1x128xi32, #tpu.memory_space<vmem>>, %arg4: memref<16x128xbf16, #tpu.memory_space<vmem>>, %arg5: memref<128x128xbf16, #tpu.memory_space<vmem>>, %arg6: memref<16x1xf32, #tpu.memory_space<vmem>>, %arg7: memref<16x1xf32, #tpu.memory_space<vmem>>, %arg8: memref<16x1xf32, #tpu.memory_space<vmem>>, %arg9: memref<16x1xf32, #tpu.memory_space<vmem>>) attributes {dimension_semantics = [#tpu.dimension_semantics<parallel>, #tpu.dimension_semantics<arbitrary>], iteration_bounds = array<i64: 1, 1>, scalar_prefetch = 0 : i64, scratch_operands = 3 : i64, tpu.core_type = #tpu.core_type<tc>, window_params = [{transform_indices = @transform_0, window_bounds = array<i64: 16, 1>}, {transform_indices = @transform_1, window_bounds = array<i64: 1, 128>}, {transform_indices = @transform_2, window_bounds = array<i64: 16, 128>}, {transform_indices = @transform_3, window_bounds = array<i64: 128, 128>}, {transform_indices = @transform_4, window_bounds = array<i64: 16, 1>}]} {
    %c0_i32 = arith.constant 0 : i32
    %0 = arith.cmpi eq, %arg1, %c0_i32 : i32
    %1 = arith.extui %0 : i1 to i32
    %c0_i32_0 = arith.constant 0 : i32
    %2 = arith.cmpi ne, %1, %c0_i32_0 : i32
    scf.if %2 {
      %cst_27 = arith.constant 0.000000e+00 : f32
      %51 = vector.broadcast %cst_27 : f32 to vector<16x1xf32>
      %c0_28 = arith.constant 0 : index
      %c0_29 = arith.constant 0 : index
      %52 = vector.load %arg7[%c0_28, %c0_29] : memref<16x1xf32, #tpu.memory_space<vmem>>, vector<16x1xf32>
      tpu.vector_store %arg7[%c0_28, %c0_29], %51 {strides = array<i32>} : memref<16x1xf32, #tpu.memory_space<vmem>>, vector<16x1xf32>,
      %cst_30 = arith.constant 0.000000e+00 : f32
      %53 = vector.broadcast %cst_30 : f32 to vector<16x1xf32>
      %c0_31 = arith.constant 0 : index
      %c0_32 = arith.constant 0 : index
      %54 = vector.load %arg8[%c0_31, %c0_32] : memref<16x1xf32, #tpu.memory_space<vmem>>, vector<16x1xf32>
      tpu.vector_store %arg8[%c0_31, %c0_32], %53 {strides = array<i32>} : memref<16x1xf32, #tpu.memory_space<vmem>>, vector<16x1xf32>,
      %cst_33 = arith.constant 0.000000e+00 : f32
      %55 = vector.broadcast %cst_33 : f32 to vector<16x1xf32>
      %c0_34 = arith.constant 0 : index
      %c0_35 = arith.constant 0 : index
      %56 = vector.load %arg9[%c0_34, %c0_35] : memref<16x1xf32, #tpu.memory_space<vmem>>, vector<16x1xf32>
      tpu.vector_store %arg9[%c0_34, %c0_35], %55 {strides = array<i32>} : memref<16x1xf32, #tpu.memory_space<vmem>>, vector<16x1xf32>,
    } else {
    }
    %c0 = arith.constant 0 : index
    %c0_1 = arith.constant 0 : index
    %3 = vector.load %arg4[%c0, %c0_1] : memref<16x128xbf16, #tpu.memory_space<vmem>>, vector<16x128xbf16>
    %c0_2 = arith.constant 0 : index
    %c0_3 = arith.constant 0 : index
    %4 = vector.load %arg5[%c0_2, %c0_3] : memref<128x128xbf16, #tpu.memory_space<vmem>>, vector<128x128xbf16>
    %cst = arith.constant dense<0.000000e+00> : vector<16x128xf32>
    %5 = tpu.matmul %3, %4, %cst {dimension_numbers = #tpu.dot_dimension_numbers<[1], [1], [0], [0], [0, 0, 1, 0], [], []>} : vector<16x128xbf16>, vector<128x128xbf16>, vector<16x128xf32> -> vector<16x128xf32>
    %cst_4 = arith.constant 14.2857141 : f32
    %6 = vector.broadcast %cst_4 : f32 to vector<16x128xf32>
    %7 = arith.mulf %5, %6 : vector<16x128xf32>
    %c16_i32 = arith.constant 16 : i32
    %8 = arith.muli %arg0, %c16_i32 : i32
    %9 = tpu.iota {dimensions = array<i32: 0>} : vector<16x128xi32>
    %10 = vector.broadcast %8 : i32 to vector<16x128xi32>
    %11 = arith.addi %10, %9 : vector<16x128xi32>
    %c128_i32 = arith.constant 128 : i32
    %12 = arith.muli %arg1, %c128_i32 : i32
    %13 = tpu.iota {dimensions = array<i32: 1>} : vector<16x128xi32>
    %14 = vector.broadcast %12 : i32 to vector<16x128xi32>
    %15 = arith.addi %14, %13 : vector<16x128xi32>
    %16 = arith.cmpi ne, %11, %15 : vector<16x128xi32>
    %c16_i32_5 = arith.constant 16 : i32
    %17 = vector.broadcast %c16_i32_5 : i32 to vector<16x128xi32>
    %18 = arith.cmpi slt, %15, %17 : vector<16x128xi32>
    %19 = arith.andi %16, %18 : vector<16x128xi1>
    %20 = arith.extui %19 : vector<16x128xi1> to vector<16x128xi32>
    %21 = arith.sitofp %20 : vector<16x128xi32> to vector<16x128xf32>
    %c0_6 = arith.constant 0 : index
    %c0_7 = arith.constant 0 : index
    %22 = vector.load %arg2[%c0_6, %c0_7] : memref<16x1xi32, #tpu.memory_space<vmem>>, vector<16x1xi32>
    %c0_8 = arith.constant 0 : index
    %c0_9 = arith.constant 0 : index
    %23 = vector.load %arg3[%c0_8, %c0_9] : memref<1x128xi32, #tpu.memory_space<vmem>>, vector<1x128xi32>
    %24 = vector.broadcast %22 : vector<16x1xi32> to vector<16x128xi32>
    %25 = vector.broadcast %23 : vector<1x128xi32> to vector<16x128xi32>
    %26 = arith.cmpi eq, %24, %25 : vector<16x128xi32>
    %27 = arith.andi %26, %19 : vector<16x128xi1>
    %28 = arith.extui %27 : vector<16x128xi1> to vector<16x128xi32>
    %29 = arith.sitofp %28 : vector<16x128xi32> to vector<16x128xf32>
    %c0_10 = arith.constant 0 : index
    %c0_11 = arith.constant 0 : index
    %30 = vector.load %arg7[%c0_10, %c0_11] : memref<16x1xf32, #tpu.memory_space<vmem>>, vector<16x1xf32>
    %31 = math.exp %7 : vector<16x128xf32>
    %32 = arith.mulf %31, %21 : vector<16x128xf32>
    %cst_12 = arith.constant dense<0.000000e+00> : vector<16xf32>
    %33 = vector.multi_reduction <add>, %32, %cst_12 [1] : vector<16x128xf32> to vector<16xf32>
    %34 = vector.shape_cast %33 : vector<16xf32> to vector<16x1xf32>
    %35 = arith.addf %30, %34 : vector<16x1xf32>
    %c0_13 = arith.constant 0 : index
    %c0_14 = arith.constant 0 : index
    %36 = vector.load %arg7[%c0_13, %c0_14] : memref<16x1xf32, #tpu.memory_space<vmem>>, vector<16x1xf32>
    tpu.vector_store %arg7[%c0_13, %c0_14], %35 {strides = array<i32>} : memref<16x1xf32, #tpu.memory_space<vmem>>, vector<16x1xf32>,
    %c0_15 = arith.constant 0 : index
    %c0_16 = arith.constant 0 : index
    %37 = vector.load %arg8[%c0_15, %c0_16] : memref<16x1xf32, #tpu.memory_space<vmem>>, vector<16x1xf32>
    %38 = arith.mulf %29, %7 : vector<16x128xf32>
    %cst_17 = arith.constant dense<0.000000e+00> : vector<16xf32>
    %39 = vector.multi_reduction <add>, %38, %cst_17 [1] : vector<16x128xf32> to vector<16xf32>
    %40 = vector.shape_cast %39 : vector<16xf32> to vector<16x1xf32>
    %41 = arith.addf %37, %40 : vector<16x1xf32>
    %c0_18 = arith.constant 0 : index
    %c0_19 = arith.constant 0 : index
    %42 = vector.load %arg8[%c0_18, %c0_19] : memref<16x1xf32, #tpu.memory_space<vmem>>, vector<16x1xf32>
    tpu.vector_store %arg8[%c0_18, %c0_19], %41 {strides = array<i32>} : memref<16x1xf32, #tpu.memory_space<vmem>>, vector<16x1xf32>,
    %c0_20 = arith.constant 0 : index
    %c0_21 = arith.constant 0 : index
    %43 = vector.load %arg9[%c0_20, %c0_21] : memref<16x1xf32, #tpu.memory_space<vmem>>, vector<16x1xf32>
    %cst_22 = arith.constant dense<0.000000e+00> : vector<16xf32>
    %44 = vector.multi_reduction <add>, %29, %cst_22 [1] : vector<16x128xf32> to vector<16xf32>
    %45 = vector.shape_cast %44 : vector<16xf32> to vector<16x1xf32>
    %46 = arith.addf %43, %45 : vector<16x1xf32>
    %c0_23 = arith.constant 0 : index
    %c0_24 = arith.constant 0 : index
    %47 = vector.load %arg9[%c0_23, %c0_24] : memref<16x1xf32, #tpu.memory_space<vmem>>, vector<16x1xf32>
    tpu.vector_store %arg9[%c0_23, %c0_24], %46 {strides = array<i32>} : memref<16x1xf32, #tpu.memory_space<vmem>>, vector<16x1xf32>,
    %c0_i32_25 = arith.constant 0 : i32
    %48 = arith.cmpi eq, %arg1, %c0_i32_25 : i32
    %49 = arith.extui %48 : i1 to i32
    %c0_i32_26 = arith.constant 0 : i32
    %50 = arith.cmpi ne, %49, %c0_i32_26 : i32
    scf.if %50 {
      %c0_27 = arith.constant 0 : index
      %c0_28 = arith.constant 0 : index
      %51 = vector.load %arg9[%c0_27, %c0_28] : memref<16x1xf32, #tpu.memory_space<vmem>>, vector<16x1xf32>
      %52 = tpu.reciprocal %51 {approx = true} : vector<16x1xf32> -> vector<16x1xf32>
      %c0_29 = arith.constant 0 : index
      %c0_30 = arith.constant 0 : index
      %53 = vector.load %arg8[%c0_29, %c0_30] : memref<16x1xf32, #tpu.memory_space<vmem>>, vector<16x1xf32>
      %54 = arith.mulf %53, %52 : vector<16x1xf32>
      %c0_31 = arith.constant 0 : index
      %c0_32 = arith.constant 0 : index
      %55 = vector.load %arg7[%c0_31, %c0_32] : memref<16x1xf32, #tpu.memory_space<vmem>>, vector<16x1xf32>
      %56 = math.log %55 : vector<16x1xf32>
      %57 = arith.subf %54, %56 : vector<16x1xf32>
      %cst_33 = arith.constant -1.000000e+00 : f32
      %58 = vector.broadcast %cst_33 : f32 to vector<16x1xf32>
      %59 = arith.mulf %58, %57 : vector<16x1xf32>
      %c0_34 = arith.constant 0 : index
      %c0_35 = arith.constant 0 : index
      %60 = vector.load %arg6[%c0_34, %c0_35] : memref<16x1xf32, #tpu.memory_space<vmem>>, vector<16x1xf32>
      tpu.vector_store %arg6[%c0_34, %c0_35], %59 {strides = array<i32>} : memref<16x1xf32, #tpu.memory_space<vmem>>, vector<16x1xf32>,
    } else {
    }
    return
  }
  func.func @transform_0(%arg0: i32, %arg1: i32) -> (i32, i32) {
    %c0_i32 = arith.constant 0 : i32
    %c0_i32_0 = arith.constant 0 : i32
    return %arg0, %c0_i32 : i32, i32
  }
  func.func @transform_1(%arg0: i32, %arg1: i32) -> (i32, i32) {
    %c0_i32 = arith.constant 0 : i32
    %c0_i32_0 = arith.constant 0 : i32
    return %c0_i32, %arg1 : i32, i32
  }
  func.func @transform_2(%arg0: i32, %arg1: i32) -> (i32, i32) {
    %c0_i32 = arith.constant 0 : i32
    %c0_i32_0 = arith.constant 0 : i32
    return %arg0, %c0_i32 : i32, i32
  }
  func.func @transform_3(%arg0: i32, %arg1: i32) -> (i32, i32) {
    %c0_i32 = arith.constant 0 : i32
    %c0_i32_0 = arith.constant 0 : i32
    return %arg1, %c0_i32 : i32, i32
  }
  func.func @transform_4(%arg0: i32, %arg1: i32) -> (i32, i32) {
    %c0_i32 = arith.constant 0 : i32
    %c0_i32_0 = arith.constant 0 : i32
    return %arg0, %c0_i32 : i32, i32
  }
}

</mosaic_0001>

<llo_original>
// kernel: tpu_custom_call.1
$region0: #{tpu_custom_call.1}
  #allocation0 [shape = 'u32[]', space=smem, size = 0x4, offset = 0x4, fixed_abs, tag = 'smem constant byte address 0x4 - core index']
  #allocation1 [shape = 'u32[144,128]{1,0:T(1,128)}', space=vmem, size = 0x12000, scoped, tag = 'internal scratch']
  #allocation2 [shape = 'f32[16,1]{1,0:T(8,128)}', space=vmem, size = 0x2000, scoped, tag = 'scratch operand']
  #allocation3 [shape = 'f32[16,1]{1,0:T(8,128)}', space=vmem, size = 0x2000, scoped, tag = 'scratch operand']
  #allocation4 [shape = 'f32[16,1]{1,0:T(8,128)}', space=vmem, size = 0x2000, scoped, tag = 'scratch operand']
  %s0 = inlined_call_operand.vmem [shape: s32[16,1], index: 0, kind: input, shape index: {}]
  %s1 = inlined_call_operand.vmem [shape: s32[1,128], index: 1, kind: input, shape index: {}]
  %s2 = inlined_call_operand.vmem [shape: bf16[16,128], index: 2, kind: input, shape index: {}]
  %s3 = inlined_call_operand.hbm [shape: bf16[128,128], index: 3, kind: input, shape index: {}]
  %s4 = inlined_call_operand.vmem [shape: f32[16,1], index: 4, kind: output, shape index: {}]
  %s5 = sld [smem:[#allocation0]]
  $region38: #{tpu_custom_call.1} parent=0
    _
  %s7 = ssub.s32 1, %s5
  %s8 = scalar_select 0, %s7, %s5
  $region1: #{tpu_custom_call.1} parent=0
    #allocation5 [shape = 'u8[32768]{0}', space=vmem, size = 0x8000, scoped, tag = 'input window, operand 3, single buffered']
    #allocation6 [shape = 's32[1]{0}', space=sflag, size = 0x4, scoped, tag = 'scoped memory for tpu_custom_call.1']
    %9 = vsyncpa [#allocation6], 0
    // Predicated region
    $region2: #{tpu_custom_call.1} parent=1 // pred_check
      _
    $region3: #{tpu_custom_call.1} parent=1 // pred_check_branch
      %11 = sbr.rel (0) target = $region5
    $region4: #{tpu_custom_call.1} parent=1 // pred_region
      _
    $region5: #{tpu_custom_call.1} parent=1 // pred_fallthru
      _
    // Predicated region
    $region6: #{tpu_custom_call.1} parent=1 // pred_check
      _
    $region7: #{tpu_custom_call.1} parent=1 // pred_check_branch
      %13 = sbr.rel (0) target = $region9
    $region8: #{tpu_custom_call.1} parent=1 // pred_region
      _
    $region9: #{tpu_custom_call.1} parent=1 // pred_fallthru
      _
    // Predicated region
    $region10: #{tpu_custom_call.1} parent=1 // pred_check
      _
    $region11: #{tpu_custom_call.1} parent=1 // pred_check_branch
      %15 = sbr.rel (0) target = $region13
    $region12: #{tpu_custom_call.1} parent=1 // pred_region
      _
    $region13: #{tpu_custom_call.1} parent=1 // pred_fallthru
      _
    // Predicated region
    $region14: #{tpu_custom_call.1} parent=1 // pred_check
      _
    $region15: #{tpu_custom_call.1} parent=1 // pred_check_branch
      %17 = sbr.rel (0) target = $region17
    $region16: #{tpu_custom_call.1} parent=1 // pred_region
      %s19 = ssub.s32 1024, 1024
      %20 = vsyncadd [#allocation6], %s19
      %s21 = sshll.u32 [#allocation5], 4
      %s22 = int_to_ptr.vmem [resolvable:$true] %s21
      %27 = dma.hbm_to_vmem [thread:$0]  %s3, 1024, %s22, [#allocation6], 64, 64, 4
    $region17: #{tpu_custom_call.1} parent=1 // pred_fallthru
      _
    // Predicated region
    $region18: #{tpu_custom_call.1} parent=1 // pred_check
      _
    $region19: #{tpu_custom_call.1} parent=1 // pred_check_branch
      %29 = sbr.rel (0) target = $region21
    $region20: #{tpu_custom_call.1} parent=1 // pred_region
      %30 = dma.done [#allocation6], 1024
    $region21: #{tpu_custom_call.1} parent=1 // pred_fallthru
      _
    %p32 = scmp.eq.s32.totalorder 0, 0
    // Predicated region
    $region22: #{tpu_custom_call.1} parent=1 // pred_check
      %p33 = pneg %p32
    $region23: #{tpu_custom_call.1} parent=1 // pred_check_branch
      %35 = sbr.rel (%p33) target = $region25
    $region24: #{tpu_custom_call.1} parent=1 // pred_region
      %vm36 = vcmask 7168
      %37 = vst.msk [vmem:[#allocation2] sm:$0xff] %vm36, 0.0
      %38 = vst.msk [vmem:[#allocation2 + $0x8] sm:$0xff] %vm36, 0.0
      %39 = vst.msk [vmem:[#allocation3] sm:$0xff] %vm36, 0.0
      %40 = vst.msk [vmem:[#allocation3 + $0x8] sm:$0xff] %vm36, 0.0
      %41 = vst.msk [vmem:[#allocation4] sm:$0xff] %vm36, 0.0
      %42 = vst.msk [vmem:[#allocation4 + $0x8] sm:$0xff] %vm36, 0.0
    $region25: #{tpu_custom_call.1} parent=1 // pred_fallthru
      _
    %v43 = vld [vmem:[%s2] sm:$0xf]
    %v44 = vld [vmem:[%s2 + $0x4] sm:$0xf]
    %v45 = vld [vmem:[#allocation5] sm:$0xf]
    %v46 = vld [vmem:[#allocation5 + $0x4] sm:$0xf]
    %v47 = vld [vmem:[#allocation5 + $0x8] sm:$0xf]
    %v48 = vld [vmem:[#allocation5 + $0xc] sm:$0xf]
    %v49 = vld [vmem:[#allocation5 + $0x10] sm:$0xf]
    %v50 = vld [vmem:[#allocation5 + $0x14] sm:$0xf]
    %v51 = vld [vmem:[#allocation5 + $0x18] sm:$0xf]
    %v52 = vld [vmem:[#allocation5 + $0x1c] sm:$0xf]
    %v53 = vld [vmem:[#allocation5 + $0x20] sm:$0xf]
    %v54 = vld [vmem:[#allocation5 + $0x24] sm:$0xf]
    %v55 = vld [vmem:[#allocation5 + $0x28] sm:$0xf]
    %v56 = vld [vmem:[#allocation5 + $0x2c] sm:$0xf]
    %v57 = vld [vmem:[#allocation5 + $0x30] sm:$0xf]
    %v58 = vld [vmem:[#allocation5 + $0x34] sm:$0xf]
    %v59 = vld [vmem:[#allocation5 + $0x38] sm:$0xf]
    %v60 = vld [vmem:[#allocation5 + $0x3c] sm:$0xf]
    %v63 = vunpack.c.l.b16 %v43
    %v64 = vunpack.c.l.b16 %v44
    %v65 = vpack.c.b16 %v64, %v63
    %v83 = vunpack.c.l.b16 %v45
    %v84 = vunpack.c.l.b16 %v46
    %v85 = vunpack.c.l.b16 %v47
    %v86 = vunpack.c.l.b16 %v48
    %v87 = vunpack.c.l.b16 %v49
    %v88 = vunpack.c.l.b16 %v50
    %v89 = vunpack.c.l.b16 %v51
    %v90 = vunpack.c.l.b16 %v52
    %v91 = vunpack.c.l.b16 %v53
    %v92 = vunpack.c.l.b16 %v54
    %v93 = vunpack.c.l.b16 %v55
    %v94 = vunpack.c.l.b16 %v56
    %v95 = vunpack.c.l.b16 %v57
    %v96 = vunpack.c.l.b16 %v58
    %v97 = vunpack.c.l.b16 %v59
    %v98 = vunpack.c.l.b16 %v60
    %v99 = vpack.c.b16 %v84, %v83
    %v100 = vpack.c.b16 %v86, %v85
    %v101 = vpack.c.b16 %v88, %v87
    %v102 = vpack.c.b16 %v90, %v89
    %v103 = vpack.c.b16 %v92, %v91
    %v104 = vpack.c.b16 %v94, %v93
    %v105 = vpack.c.b16 %v96, %v95
    %v106 = vpack.c.b16 %v98, %v97
    %115 = vmatprep.subr.bf16.mxu0 0
    %116 = vmatpush1.bf16.xpose.msra.mxu0 %v99
    %117 = vmatprep.subr.bf16.mxu0 0
    %118 = vmatpush1.bf16.xpose.msra.mxu0 %v100
    %119 = vmatprep.subr.bf16.mxu0 0
    %120 = vmatpush1.bf16.xpose.msra.mxu0 %v101
    %121 = vmatprep.subr.bf16.mxu0 0
    %122 = vmatpush1.bf16.xpose.msra.mxu0 %v102
    %123 = vmatprep.subr.bf16.mxu0 0
    %124 = vmatpush1.bf16.xpose.msra.mxu0 %v103
    %125 = vmatprep.subr.bf16.mxu0 0
    %126 = vmatpush1.bf16.xpose.msra.mxu0 %v104
    %127 = vmatprep.subr.bf16.mxu0 0
    %128 = vmatpush1.bf16.xpose.msra.mxu0 %v105
    %129 = vmatprep.subr.bf16.mxu0 0
    %130 = vmatpush1.bf16.xpose.msra.mxu0 %v106
    %131 = vmatprep.subr.bf16.mxu0 0
    %132 = vmatpush1.bf16.xpose.msra.mxu0 0
    %133 = vmatprep.subr.bf16.mxu0 0
    %134 = vmatpush1.bf16.xpose.msra.mxu0 0
    %135 = vmatprep.subr.bf16.mxu0 0
    %136 = vmatpush1.bf16.xpose.msra.mxu0 0
    %137 = vmatprep.subr.bf16.mxu0 0
    %138 = vmatpush1.bf16.xpose.msra.mxu0 0
    %139 = vmatprep.subr.bf16.mxu0 0
    %140 = vmatpush1.bf16.xpose.msra.mxu0 0
    %141 = vmatprep.subr.bf16.mxu0 0
    %142 = vmatpush1.bf16.xpose.msra.mxu0 0
    %143 = vmatprep.subr.bf16.mxu0 0
    %144 = vmatpush1.bf16.xpose.msra.mxu0 0
    %145 = vmatprep.subr.bf16.mxu0 0
    %146 = vmatpush1.bf16.xpose.msra.mxu0 0
    %147 = vmatprep.mubr.bf16.mxu0 0
    %148 = vmatmul.mubr.bf16.gmra.mrb[0].mxu0 %v65
    %v149 = vpop.f32.mrb[0].mxu0
    %v150 = vadd.f32 0.0, %v149
    %v151 = vpop.f32.mrb[0].mxu0
    %v152 = vpop.f32.mrb[0].mxu0
    %v153 = vadd.f32 0.0, %v152
    %v154 = vpop.f32.mrb[0].mxu0
    %155 = vdwg.mxu0
    %v156 = vmul.f32 %v150, 14.285714
    %v157 = vmul.f32 %v153, 14.285714
    %s158 = smul.u32 0, 16
    %v159 = vlaneseq
    %v160 = vshrl.u32 %v159, 7
    %v161 = vadd.s32 %v160, 8
    %v162 = vstv %s158
    %v163 = vadd.s32 %v162, %v160
    %v164 = vadd.s32 %v162, %v161
    %s165 = smul.u32 0, 128
    %v166 = vlaneseq
    %v167 = vand.u32 %v166, 127
    %v168 = vstv %s165
    %v169 = vadd.s32 %v168, %v167
    %vm170 = vcmp.ne.s32.totalorder %v163, %v169
    %vm171 = vcmp.ne.s32.totalorder %v164, %v169
    %vm172 = vcmp.lt.s32.totalorder %v169, 16
    %vm173 = vmand %vm170, %vm172
    %vm174 = vmand %vm171, %vm172
    %v175 = vsel %vm173, 1, 0
    %v176 = vsel %vm174, 1, 0
    %v177 = vcvt.s32.f32 %v175
    %v178 = vcvt.s32.f32 %v176
    %v179 = vld [vmem:[%s0] sm:$0xff]
    %v180 = vld [vmem:[%s0 + $0x8] sm:$0xff]
    %v181 = vld [vmem:[%s1] sm:$0x1]
    %182 = vset.pattern.permute.xlu0 0
    %183 = vperm.xlu0 %182, %v179
    %v184 = vpop.permute.xlu0 %183
    %185 = vset.pattern.permute.xlu0 0
    %186 = vperm.xlu0 %185, %v180
    %v187 = vpop.permute.xlu0 %186
    %v188 = vlaneseq
    %v189 = vshrl.u32 %v188, 7
    %v190 = vsub.s32 0, %v189
    %v191 = vrot.slane %v181, %v190
    %vm192 = vcmp.eq.s32.totalorder %v184, %v191
    %vm193 = vcmp.eq.s32.totalorder %v187, %v191
    %vm194 = vmand %vm192, %vm173
    %vm195 = vmand %vm193, %vm174
    %v196 = vsel %vm194, 1, 0
    %v197 = vsel %vm195, 1, 0
    %v198 = vcvt.s32.f32 %v196
    %v199 = vcvt.s32.f32 %v197
    %v200 = vld [vmem:[#allocation2] sm:$0xff]
    %v201 = vld [vmem:[#allocation2 + $0x8] sm:$0xff]
    %v202 = vmul.f32 %v156, 1.442695
    %v203 = vpow.pop %v202
    %v204 = vmul.f32 %v157, 1.442695
    %v205 = vpow.pop %v204
    %v206 = vmul.f32 %v203, %v177
    %v207 = vmul.f32 %v205, %v178
    %208 = vadd.xlane.f32.xlu0 %v206
    %v209 = vpop.xlane.xlu0 %208
    %210 = vadd.xlane.f32.xlu0 %v207
    %v211 = vpop.xlane.xlu0 %210
    %v212 = vadd.f32 %v200, %v209
    %v213 = vadd.f32 %v201, %v211
    %vm214 = vcmask 7168
    %215 = vst.msk [vmem:[#allocation2] sm:$0xff] %vm214, %v212
    %216 = vst.msk [vmem:[#allocation2 + $0x8] sm:$0xff] %vm214, %v213
    %v217 = vld [vmem:[#allocation3] sm:$0xff]
    %v218 = vld [vmem:[#allocation3 + $0x8] sm:$0xff]
    %v219 = vmul.f32 %v198, %v156
    %v220 = vmul.f32 %v199, %v157
    %221 = vadd.xlane.f32.xlu0 %v219
    %v222 = vpop.xlane.xlu0 %221
    %223 = vadd.xlane.f32.xlu0 %v220
    %v224 = vpop.xlane.xlu0 %223
    %v225 = vadd.f32 %v217, %v222
    %v226 = vadd.f32 %v218, %v224
    %227 = vst.msk [vmem:[#allocation3] sm:$0xff] %vm214, %v225
    %228 = vst.msk [vmem:[#allocation3 + $0x8] sm:$0xff] %vm214, %v226
    %v229 = vld [vmem:[#allocation4] sm:$0xff]
    %v230 = vld [vmem:[#allocation4 + $0x8] sm:$0xff]
    %231 = vadd.xlane.f32.xlu0 %v198
    %v232 = vpop.xlane.xlu0 %231
    %233 = vadd.xlane.f32.xlu0 %v199
    %v234 = vpop.xlane.xlu0 %233
    %v235 = vadd.f32 %v229, %v232
    %v236 = vadd.f32 %v230, %v234
    %237 = vst.msk [vmem:[#allocation4] sm:$0xff] %vm214, %v235
    %238 = vst.msk [vmem:[#allocation4 + $0x8] sm:$0xff] %vm214, %v236
    // Predicated region
    $region26: #{tpu_custom_call.1} parent=1 // pred_check
      %p239 = pneg %p32
    $region27: #{tpu_custom_call.1} parent=1 // pred_check_branch
      %241 = sbr.rel (%p239) target = $region29
    $region28: #{tpu_custom_call.1} parent=1 // pred_region
      %v242 = vld [vmem:[#allocation4] sm:$0xff]
      %v243 = vld [vmem:[#allocation4 + $0x8] sm:$0xff]
      %v244 = vrcp.pop %v242
      %v245 = vrcp.pop %v243
      %v246 = vld [vmem:[#allocation3] sm:$0xff]
      %v247 = vld [vmem:[#allocation3 + $0x8] sm:$0xff]
      %v248 = vmul.f32 %v246, %v244
      %v249 = vmul.f32 %v247, %v245
      %v250 = vld [vmem:[#allocation2] sm:$0xff]
      %v251 = vld [vmem:[#allocation2 + $0x8] sm:$0xff]
      %v252 = vlog2.pop %v250
      %v253 = vmul.f32 %v252, 0.6931472
      %v254 = vlog2.pop %v251
      %v255 = vmul.f32 %v254, 0.6931472
      %v256 = vsub.f32 %v248, %v253
      %v257 = vsub.f32 %v249, %v255
      %v258 = vmul.f32 %v256, -1.0
      %v259 = vmul.f32 %v257, -1.0
      %260 = vst.msk [vmem:[%s4] sm:$0xff] %vm214, %v258
      %261 = vst.msk [vmem:[%s4 + $0x8] sm:$0xff] %vm214, %v259
    $region29: #{tpu_custom_call.1} parent=1 // pred_fallthru
      _
    // Predicated region
    $region30: #{tpu_custom_call.1} parent=1 // pred_check
      _
    $region31: #{tpu_custom_call.1} parent=1 // pred_check_branch
      %263 = sbr.rel (0) target = $region33
    $region32: #{tpu_custom_call.1} parent=1 // pred_region
      _
    $region33: #{tpu_custom_call.1} parent=1 // pred_fallthru
      _
    // Predicated region
    $region34: #{tpu_custom_call.1} parent=1 // pred_check
      _
    $region35: #{tpu_custom_call.1} parent=1 // pred_check_branch
      %265 = sbr.rel (0) target = $region37
    $region36: #{tpu_custom_call.1} parent=1 // pred_region
      _
    $region37: #{tpu_custom_call.1} parent=1 // pred_fallthru
      _
    %266 = vsyncpa [#allocation6], 1

</llo_original>
